<compile_context>
chip_gen: v7x
topology: tpu7x:2x2x1
jax: 0.10.0
libtpu: 0.0.40
codegen_flags: <defaults>
</compile_context>

<pallas_src>
import functools

import jax
import jax.numpy as jnp
from jax.experimental import pallas as pl
from jax.experimental.pallas import tpu as pltpu


def pointnetfeat_kernel(
    x_ref,             # (TB, Cin, TN) bf16, lane-dense point tile (NCW layout)
    w1_ref, t1_ref,    # (Cin, C1) bf16, (1, C1) f32  (BN folded)
    w2_ref, t2_ref,    # (C1,  C2) bf16, (1, C2) f32
    w3_ref, t3_ref,    # (C2,  C3) bf16, (1, C3) f32
    out_ref,           # (TB, C3) f32 running max, resident across the N axis
    *, n_points, tile_n,
):
    ni = pl.program_id(1)

    @pl.when(ni == 0)
    def _init():
        out_ref[...] = jnp.full(out_ref.shape, -jnp.inf, out_ref.dtype)

    tb, cin, tn = x_ref.shape

    # Lane-dense (TB, Cin, TN) tile -> flattened channels-last (TB*TN, Cin).
    # Only TB*Cin*TN (<= ~16K) elements move through this relayout; the
    # matmul chain then runs once with a single big M = TB*TN per layer.
    x = x_ref[...]                                        # bf16
    x = jnp.transpose(x, (0, 2, 1)).reshape(tb * tn, cin)

    # Layer 1: 1x1 conv (+ folded BN) + ReLU.  K = Cin <= 4 is mostly MXU
    # padding but <1% of total flops -- layer 3 dominates.
    h = jnp.dot(x, w1_ref[...], preferred_element_type=jnp.float32)
    h = jnp.maximum(h + t1_ref[...], 0.0).astype(jnp.bfloat16)

    # Layer 2
    h = jnp.dot(h, w2_ref[...], preferred_element_type=jnp.float32)
    h = jnp.maximum(h + t2_ref[...], 0.0).astype(jnp.bfloat16)

    # Layer 3 (no ReLU)
    h = jnp.dot(h, w3_ref[...], preferred_element_type=jnp.float32)
    h = h + t3_ref[...]                                   # (TB*TN, C3) f32

    # Max over the points axis (torch.max(x, 2)); merge into the resident max.
    h = h.reshape(tb, tn, h.shape[-1])                    # (TB, TN, C3)
    if n_points % tile_n != 0:
        # Tail tile: mask out-of-range point columns (no HBM pad copy of x).
        pt = ni * tile_n + jax.lax.broadcasted_iota(jnp.int32, (1, tn, 1), 1)
        h = jnp.where(pt < n_points, h, -jnp.inf)
    tile_max = jnp.max(h, axis=1)                         # (TB, C3) f32

    out_ref[...] = jnp.maximum(out_ref[...], tile_max)    # one dense store


def _fold_bn_into_weights(w, bias, gamma, beta, mean, var, eps=1e-5):
    """Fold conv bias + inference BN into (bf16 weight, f32 per-channel shift)."""
    scale = gamma / jnp.sqrt(var + eps)                   # (Cout,)
    w_folded = (w * scale[None, :]).astype(jnp.bfloat16)  # (Cin, Cout)
    shift = (beta + (bias - mean) * scale).reshape(1, -1).astype(jnp.float32)
    return w_folded, shift


def _choose_tn(n, tb):
    """Points tile.  Small clouds: one full-extent tile (legal full-dim block).
    Large clouds: 128-aligned tile, capped so the flattened f32 layer-3
    intermediate (TB*TN x C3) stays a few MiB, while keeping M = TB*TN >= 512
    for the 256-wide v6e/v7x MXU."""
    if n <= 512:
        return n
    return 256 if tb >= 8 else 512


def pointnetfeat_forward(x_ncw, params, eps=1e-5):
    """x_ncw: (B, pts_dim, N) float32 -- same NCW layout as the PyTorch module."""
    B, Cin, N = x_ncw.shape

    w1, t1 = _fold_bn_into_weights(params["w1"], params["b1"], *params["bn1"], eps=eps)
    w2, t2 = _fold_bn_into_weights(params["w2"], params["b2"], *params["bn2"], eps=eps)
    w3, t3 = _fold_bn_into_weights(params["w3"], params["b3"], *params["bn3"], eps=eps)
    C1, C2, C3 = w1.shape[1], w2.shape[1], w3.shape[1]

    # bf16 activations into the kernel: halves x DMA bytes and the x VMEM
    # tile; numerics unchanged (kernel computes layer 1 in bf16 anyway).
    x = x_ncw.astype(jnp.bfloat16)

    # Batch tiling: TB must be a multiple of 8 or the full batch dim so the
    # (TB, C3) out block satisfies the (8,128) rule (dense, legal stores).
    B_pad = B
    if B > 8 and B % 8 != 0:
        B_pad = -(-B // 8) * 8
        x = jnp.pad(x, ((0, B_pad - B), (0, 0), (0, 0)))   # padded rows sliced off
    TB = 8 if B_pad % 8 == 0 else B_pad

    TN = _choose_tn(N, TB)
    n_tiles = pl.cdiv(N, TN)
    grid = (B_pad // TB, n_tiles)

    kernel = functools.partial(pointnetfeat_kernel, n_points=N, tile_n=TN)
    const = lambda shape: pl.BlockSpec(shape, lambda bi, ni: (0, 0))

    flops = 2 * B * N * (Cin * C1 + C1 * C2 + C2 * C3)
    bytes_accessed = (x.size * 2
                      + (w1.size + w2.size + w3.size) * 2
                      + (t1.size + t2.size + t3.size) * 4
                      + B_pad * C3 * 4)

    out = pl.pallas_call(
        kernel,
        out_shape=jax.ShapeDtypeStruct((B_pad, C3), jnp.float32),
        grid_spec=pltpu.PrefetchScalarGridSpec(
            num_scalar_prefetch=0,
            grid=grid,
            in_specs=[
                # x: lane-dense (points in the 128-lane axis), batch-parallel
                pl.BlockSpec((TB, Cin, TN), lambda bi, ni: (bi, 0, ni)),
                const((Cin, C1)), const((1, C1)),
                const((C1, C2)), const((1, C2)),
                const((C2, C3)), const((1, C3)),
            ],
            out_specs=pl.BlockSpec((TB, C3), lambda bi, ni: (bi, 0)),
        ),
        compiler_params=pltpu.CompilerParams(
            dimension_semantics=("parallel", "arbitrary"),
            vmem_limit_bytes=32 * 1024 * 1024),
        cost_estimate=pl.CostEstimate(
            flops=flops, transcendentals=0, bytes_accessed=bytes_accessed),
    )(x, w1, t1, w2, t2, w3, t3)
    return out[:B]  # (B, C3)


def make_params(pts_dim, x_scale=1, key=jax.random.PRNGKey(0)):
    """Deterministic synthetic parameters matching PointNetfeat(pts_dim, x)."""
    c1, c2, c3 = int(64 * x_scale), int(128 * x_scale), int(512 * x_scale)
    kw = jax.random.split(key, 6)
    kbn = jax.random.split(jax.random.fold_in(key, 123), 12)

    def bn(ks, c):
        kg, kb, km, kv = ks
        gamma = 1.0 + 0.1 * jax.random.normal(kg, (c,), jnp.float32)
        beta = 0.1 * jax.random.normal(kb, (c,), jnp.float32)
        mean = 0.1 * jax.random.normal(km, (c,), jnp.float32)
        var = jax.random.uniform(kv, (c,), jnp.float32, 0.5, 1.5)
        return gamma, beta, mean, var

    return {
        # weights stored as (Cin, Cout) = PyTorch conv weight (Cout, Cin, 1) transposed
        "w1": 0.1 * jax.random.normal(kw[0], (pts_dim, c1), jnp.float32),
        "b1": 0.1 * jax.random.normal(kw[1], (c1,), jnp.float32),
        "w2": 0.1 * jax.random.normal(kw[2], (c1, c2), jnp.float32),
        "b2": 0.1 * jax.random.normal(kw[3], (c2,), jnp.float32),
        "w3": 0.1 * jax.random.normal(kw[4], (c2, c3), jnp.float32),
        "b3": 0.1 * jax.random.normal(kw[5], (c3,), jnp.float32),
        "bn1": bn(kbn[0:4], c1),
        "bn2": bn(kbn[4:8], c2),
        "bn3": bn(kbn[8:12], c3),
    }


def reference_forward(x_ncw, params, eps=1e-5):
    """Pure-JAX f32 reference reproducing the PyTorch forward (inference BN)."""
    def bn(h, bnp):  # h: (B, N, C)
        gamma, beta, mean, var = bnp
        return gamma * (h - mean) / jnp.sqrt(var + eps) + beta

    h = jnp.transpose(x_ncw, (0, 2, 1))            # (B, N, Cin)
    h = jax.nn.relu(bn(h @ params["w1"] + params["b1"], params["bn1"]))
    h = jax.nn.relu(bn(h @ params["w2"] + params["b2"], params["bn2"]))
    h = bn(h @ params["w3"] + params["b3"], params["bn3"])
    return jnp.max(h, axis=1)                      # (B, C3)


if __name__ == "__main__":
    B, PTS_DIM, N = 2, 4, 16          # small shapes: batch=2, pts_dim=4, 16 points
    X_SCALE = 1                        # channels 64 -> 128 -> 512

    key = jax.random.PRNGKey(0)
    kx, kp = jax.random.split(key)
    x = jax.random.normal(kx, (B, PTS_DIM, N), jnp.float32)   # PyTorch NCW input
    params = make_params(PTS_DIM, X_SCALE, kp)

    out = pointnetfeat_forward(x, params)
    out = jax.block_until_ready(out)

    ref = reference_forward(x, params)
    assert out.shape == (B, int(512 * X_SCALE)), out.shape
    # bf16 MXU path -> looser tolerance than an all-f32 implementation.
    assert jnp.allclose(out, ref, atol=3e-2, rtol=3e-2), (
        float(jnp.max(jnp.abs(out - ref))))

    print("KERNEL_OK")
</pallas_src>

<mosaic_0001>
module attributes {stable_mosaic.version = 11 : i64} {
  func.func @pointnetfeat_kernel(%arg0: i32, %arg1: i32, %arg2: memref<2x4x16xbf16, #tpu.memory_space<vmem>>, %arg3: memref<4x64xbf16, #tpu.memory_space<vmem>>, %arg4: memref<1x64xf32, #tpu.memory_space<vmem>>, %arg5: memref<64x128xbf16, #tpu.memory_space<vmem>>, %arg6: memref<1x128xf32, #tpu.memory_space<vmem>>, %arg7: memref<128x512xbf16, #tpu.memory_space<vmem>>, %arg8: memref<1x512xf32, #tpu.memory_space<vmem>>, %arg9: memref<2x512xf32, #tpu.memory_space<vmem>>) attributes {dimension_semantics = [#tpu.dimension_semantics<parallel>, #tpu.dimension_semantics<arbitrary>], iteration_bounds = array<i64: 1, 1>, scalar_prefetch = 0 : i64, scratch_operands = 0 : i64, tpu.core_type = #tpu.core_type<tc>, window_params = [{transform_indices = @transform_0, window_bounds = array<i64: 2, 4, 16>}, {pipeline_mode = #tpu.pipeline_mode<synchronous>, transform_indices = @transform_1, window_bounds = array<i64: 4, 64>}, {pipeline_mode = #tpu.pipeline_mode<synchronous>, transform_indices = @transform_2, window_bounds = array<i64: 1, 64>}, {pipeline_mode = #tpu.pipeline_mode<synchronous>, transform_indices = @transform_3, window_bounds = array<i64: 64, 128>}, {pipeline_mode = #tpu.pipeline_mode<synchronous>, transform_indices = @transform_4, window_bounds = array<i64: 1, 128>}, {pipeline_mode = #tpu.pipeline_mode<synchronous>, transform_indices = @transform_5, window_bounds = array<i64: 128, 512>}, {pipeline_mode = #tpu.pipeline_mode<synchronous>, transform_indices = @transform_6, window_bounds = array<i64: 1, 512>}, {transform_indices = @transform_7, window_bounds = array<i64: 2, 512>}]} {
    %c0_i32 = arith.constant 0 : i32
    %0 = arith.cmpi eq, %arg1, %c0_i32 : i32
    %1 = arith.extui %0 : i1 to i32
    %c0_i32_0 = arith.constant 0 : i32
    %2 = arith.cmpi ne, %1, %c0_i32_0 : i32
    scf.if %2 {
      %cst_24 = arith.constant 0xFF800000 : f32
      %32 = vector.broadcast %cst_24 : f32 to vector<2x512xf32>
      %c0_25 = arith.constant 0 : index
      %c0_26 = arith.constant 0 : index
      %33 = vector.load %arg9[%c0_25, %c0_26] : memref<2x512xf32, #tpu.memory_space<vmem>>, vector<2x512xf32>
      tpu.vector_store %arg9[%c0_25, %c0_26], %32 {strides = array<i32>} : memref<2x512xf32, #tpu.memory_space<vmem>>, vector<2x512xf32>,
    } else {
    }
    %c0 = arith.constant 0 : index
    %c0_1 = arith.constant 0 : index
    %c0_2 = arith.constant 0 : index
    %3 = vector.load %arg2[%c0, %c0_1, %c0_2] : memref<2x4x16xbf16, #tpu.memory_space<vmem>>, vector<2x4x16xbf16>
    %4 = tpu.transpose %3, [0, 2, 1] : vector<2x4x16xbf16> -> vector<2x16x4xbf16>
    %5 = vector.shape_cast %4 : vector<2x16x4xbf16> to vector<32x4xbf16>
    %c0_3 = arith.constant 0 : index
    %c0_4 = arith.constant 0 : index
    %6 = vector.load %arg3[%c0_3, %c0_4] : memref<4x64xbf16, #tpu.memory_space<vmem>>, vector<4x64xbf16>
    %cst = arith.constant dense<0.000000e+00> : vector<32x64xf32>
    %7 = tpu.matmul %5, %6, %cst {dimension_numbers = #tpu.dot_dimension_numbers<[1], [0], [0], [1], [0, 0, 1, 1], [], []>} : vector<32x4xbf16>, vector<4x64xbf16>, vector<32x64xf32> -> vector<32x64xf32>
    %c0_5 = arith.constant 0 : index
    %c0_6 = arith.constant 0 : index
    %8 = vector.load %arg4[%c0_5, %c0_6] : memref<1x64xf32, #tpu.memory_space<vmem>>, vector<1x64xf32>
    %9 = vector.broadcast %8 : vector<1x64xf32> to vector<32x64xf32>
    %10 = arith.addf %7, %9 : vector<32x64xf32>
    %cst_7 = arith.constant 0.000000e+00 : f32
    %11 = vector.broadcast %cst_7 : f32 to vector<32x64xf32>
    %12 = arith.maximumf %10, %11 : vector<32x64xf32>
    %13 = arith.truncf %12 : vector<32x64xf32> to vector<32x64xbf16>
    %c0_8 = arith.constant 0 : index
    %c0_9 = arith.constant 0 : index
    %14 = vector.load %arg5[%c0_8, %c0_9] : memref<64x128xbf16, #tpu.memory_space<vmem>>, vector<64x128xbf16>
    %cst_10 = arith.constant dense<0.000000e+00> : vector<32x128xf32>
    %15 = tpu.matmul %13, %14, %cst_10 {dimension_numbers = #tpu.dot_dimension_numbers<[1], [0], [0], [1], [0, 0, 1, 1], [], []>} : vector<32x64xbf16>, vector<64x128xbf16>, vector<32x128xf32> -> vector<32x128xf32>
    %c0_11 = arith.constant 0 : index
    %c0_12 = arith.constant 0 : index
    %16 = vector.load %arg6[%c0_11, %c0_12] : memref<1x128xf32, #tpu.memory_space<vmem>>, vector<1x128xf32>
    %17 = vector.broadcast %16 : vector<1x128xf32> to vector<32x128xf32>
    %18 = arith.addf %15, %17 : vector<32x128xf32>
    %cst_13 = arith.constant 0.000000e+00 : f32
    %19 = vector.broadcast %cst_13 : f32 to vector<32x128xf32>
    %20 = arith.maximumf %18, %19 : vector<32x128xf32>
    %21 = arith.truncf %20 : vector<32x128xf32> to vector<32x128xbf16>
    %c0_14 = arith.constant 0 : index
    %c0_15 = arith.constant 0 : index
    %22 = vector.load %arg7[%c0_14, %c0_15] : memref<128x512xbf16, #tpu.memory_space<vmem>>, vector<128x512xbf16>
    %cst_16 = arith.constant dense<0.000000e+00> : vector<32x512xf32>
    %23 = tpu.matmul %21, %22, %cst_16 {dimension_numbers = #tpu.dot_dimension_numbers<[1], [0], [0], [1], [0, 0, 1, 1], [], []>} : vector<32x128xbf16>, vector<128x512xbf16>, vector<32x512xf32> -> vector<32x512xf32>
    %c0_17 = arith.constant 0 : index
    %c0_18 = arith.constant 0 : index
    %24 = vector.load %arg8[%c0_17, %c0_18] : memref<1x512xf32, #tpu.memory_space<vmem>>, vector<1x512xf32>
    %25 = vector.broadcast %24 : vector<1x512xf32> to vector<32x512xf32>
    %26 = arith.addf %23, %25 : vector<32x512xf32>
    %27 = vector.shape_cast %26 : vector<32x512xf32> to vector<2x16x512xf32>
    %cst_19 = arith.constant dense<0xFF800000> : vector<2x512xf32>
    %28 = vector.multi_reduction <maximumf>, %27, %cst_19 [1] : vector<2x16x512xf32> to vector<2x512xf32>
    %c0_20 = arith.constant 0 : index
    %c0_21 = arith.constant 0 : index
    %29 = vector.load %arg9[%c0_20, %c0_21] : memref<2x512xf32, #tpu.memory_space<vmem>>, vector<2x512xf32>
    %30 = arith.maximumf %29, %28 : vector<2x512xf32>
    %c0_22 = arith.constant 0 : index
    %c0_23 = arith.constant 0 : index
    %31 = vector.load %arg9[%c0_22, %c0_23] : memref<2x512xf32, #tpu.memory_space<vmem>>, vector<2x512xf32>
    tpu.vector_store %arg9[%c0_22, %c0_23], %30 {strides = array<i32>} : memref<2x512xf32, #tpu.memory_space<vmem>>, vector<2x512xf32>,
    return
  }
  func.func @transform_0(%arg0: i32, %arg1: i32) -> (i32, i32, i32) {
    %c0_i32 = arith.constant 0 : i32
    %c0_i32_0 = arith.constant 0 : i32
    return %arg0, %c0_i32, %arg1 : i32, i32, i32
  }
  func.func @transform_1(%arg0: i32, %arg1: i32) -> (i32, i32) {
    %c0_i32 = arith.constant 0 : i32
    %c0_i32_0 = arith.constant 0 : i32
    %c0_i32_1 = arith.constant 0 : i32
    return %c0_i32, %c0_i32_0 : i32, i32
  }
  func.func @transform_2(%arg0: i32, %arg1: i32) -> (i32, i32) {
    %c0_i32 = arith.constant 0 : i32
    %c0_i32_0 = arith.constant 0 : i32
    %c0_i32_1 = arith.constant 0 : i32
    return %c0_i32, %c0_i32_0 : i32, i32
  }
  func.func @transform_3(%arg0: i32, %arg1: i32) -> (i32, i32) {
    %c0_i32 = arith.constant 0 : i32
    %c0_i32_0 = arith.constant 0 : i32
    %c0_i32_1 = arith.constant 0 : i32
    return %c0_i32, %c0_i32_0 : i32, i32
  }
  func.func @transform_4(%arg0: i32, %arg1: i32) -> (i32, i32) {
    %c0_i32 = arith.constant 0 : i32
    %c0_i32_0 = arith.constant 0 : i32
    %c0_i32_1 = arith.constant 0 : i32
    return %c0_i32, %c0_i32_0 : i32, i32
  }
  func.func @transform_5(%arg0: i32, %arg1: i32) -> (i32, i32) {
    %c0_i32 = arith.constant 0 : i32
    %c0_i32_0 = arith.constant 0 : i32
    %c0_i32_1 = arith.constant 0 : i32
    return %c0_i32, %c0_i32_0 : i32, i32
  }
  func.func @transform_6(%arg0: i32, %arg1: i32) -> (i32, i32) {
    %c0_i32 = arith.constant 0 : i32
    %c0_i32_0 = arith.constant 0 : i32
    %c0_i32_1 = arith.constant 0 : i32
    return %c0_i32, %c0_i32_0 : i32, i32
  }
  func.func @transform_7(%arg0: i32, %arg1: i32) -> (i32, i32) {
    %c0_i32 = arith.constant 0 : i32
    %c0_i32_0 = arith.constant 0 : i32
    return %arg0, %c0_i32 : i32, i32
  }
}

</mosaic_0001>

<llo_original>
// kernel: tpu_custom_call.1
$region0: #{tpu_custom_call.1}
  #allocation0 [shape = 'u32[]', space=smem, size = 0x4, offset = 0x4, fixed_abs, tag = 'smem constant byte address 0x4 - core index']
  #allocation1 [shape = 'u32[144,128]{1,0:T(1,128)}', space=vmem, size = 0x12000, scoped, tag = 'internal scratch']
  %s0 = inlined_call_operand.hbm [shape: bf16[2,4,16], index: 0, kind: input, shape index: {}]
  %s1 = inlined_call_operand.vmem [shape: bf16[4,64], index: 1, kind: input, shape index: {}]
  %s2 = inlined_call_operand.vmem [shape: f32[1,64], index: 2, kind: input, shape index: {}]
  %s3 = inlined_call_operand.hbm [shape: bf16[64,128], index: 3, kind: input, shape index: {}]
  %s4 = inlined_call_operand.vmem [shape: f32[1,128], index: 4, kind: input, shape index: {}]
  %s5 = inlined_call_operand.hbm [shape: bf16[128,512], index: 5, kind: input, shape index: {}]
  %s6 = inlined_call_operand.vmem [shape: f32[1,512], index: 6, kind: input, shape index: {}]
  %s7 = inlined_call_operand.hbm [shape: f32[2,512], index: 7, kind: output, shape index: {}]
  %s8 = sld [smem:[#allocation0]]
  $region54: #{tpu_custom_call.1} parent=0
    _
  %s10 = ssub.s32 1, %s8
  %s11 = scalar_select 0, %s10, %s8
  $region1: #{tpu_custom_call.1} parent=0
    #allocation2 [shape = 'u8[2048]{0}', space=vmem, size = 0x800, scoped, tag = 'input window, operand 0, single buffered']
    #allocation3 [shape = 's32[1]{0}', space=sflag, size = 0x4, scoped, tag = 'scoped memory for tpu_custom_call.1']
    #allocation4 [shape = 's32[1]{0}', space=sflag, size = 0x4, scoped, tag = 'scoped memory for tpu_custom_call.1']
    #allocation5 [shape = 'u8[16384]{0}', space=vmem, size = 0x4000, scoped, tag = 'input window, operand 3, single buffered']
    #allocation6 [shape = 's32[1]{0}', space=sflag, size = 0x4, scoped, tag = 'scoped memory for tpu_custom_call.1']
    #allocation7 [shape = 'u8[131072]{0}', space=vmem, size = 0x20000, scoped, tag = 'input window, operand 5, single buffered']
    #allocation8 [shape = 'u8[4096]{0}', space=vmem, size = 0x1000, scoped, tag = 'output window, operand 0, single buffered']
    %12 = vsyncpa [#allocation3], 0
    %13 = vsyncpa [#allocation6], 0
    %14 = vsyncpa [#allocation4], 0
    // Predicated region
    $region2: #{tpu_custom_call.1} parent=1 // pred_check
      _
    $region3: #{tpu_custom_call.1} parent=1 // pred_check_branch
      %16 = sbr.rel (0) target = $region5
    $region4: #{tpu_custom_call.1} parent=1 // pred_region
      %s18 = ssub.s32 64, 64
      %19 = vsyncadd [#allocation3], %s18
      %s20 = sshll.u32 [#allocation2], 4
      %s21 = int_to_ptr.vmem [resolvable:$true] %s20
      %26 = dma.hbm_to_vmem [thread:$0]  %s0, 64, %s21, [#allocation3], 32, 32, 2
    $region5: #{tpu_custom_call.1} parent=1 // pred_fallthru
      _
    // Predicated region
    $region6: #{tpu_custom_call.1} parent=1 // pred_check
      _
    $region7: #{tpu_custom_call.1} parent=1 // pred_check_branch
      %28 = sbr.rel (0) target = $region9
    $region8: #{tpu_custom_call.1} parent=1 // pred_region
      _
    $region9: #{tpu_custom_call.1} parent=1 // pred_fallthru
      _
    // Predicated region
    $region10: #{tpu_custom_call.1} parent=1 // pred_check
      _
    $region11: #{tpu_custom_call.1} parent=1 // pred_check_branch
      %30 = sbr.rel (0) target = $region13
    $region12: #{tpu_custom_call.1} parent=1 // pred_region
      _
    $region13: #{tpu_custom_call.1} parent=1 // pred_fallthru
      _
    // Predicated region
    $region14: #{tpu_custom_call.1} parent=1 // pred_check
      _
    $region15: #{tpu_custom_call.1} parent=1 // pred_check_branch
      %32 = sbr.rel (0) target = $region17
    $region16: #{tpu_custom_call.1} parent=1 // pred_region
      %s34 = ssub.s32 512, 512
      %35 = vsyncadd [#allocation6], %s34
      %s36 = sshll.u32 [#allocation5], 4
      %s37 = int_to_ptr.vmem [resolvable:$true] %s36
      %42 = dma.hbm_to_vmem [thread:$0]  %s3, 512, %s37, [#allocation6], 64, 64, 4
    $region17: #{tpu_custom_call.1} parent=1 // pred_fallthru
      _
    // Predicated region
    $region18: #{tpu_custom_call.1} parent=1 // pred_check
      _
    $region19: #{tpu_custom_call.1} parent=1 // pred_check_branch
      %44 = sbr.rel (0) target = $region21
    $region20: #{tpu_custom_call.1} parent=1 // pred_region
      _
    $region21: #{tpu_custom_call.1} parent=1 // pred_fallthru
      _
    // Predicated region
    $region22: #{tpu_custom_call.1} parent=1 // pred_check
      _
    $region23: #{tpu_custom_call.1} parent=1 // pred_check_branch
      %46 = sbr.rel (0) target = $region25
    $region24: #{tpu_custom_call.1} parent=1 // pred_region
      %s48 = ssub.s32 4096, 4096
      %49 = vsyncadd [#allocation6], %s48
      %s50 = sshll.u32 [#allocation7], 4
      %s51 = int_to_ptr.vmem [resolvable:$true] %s50
      %56 = dma.hbm_to_vmem [thread:$0]  %s5, 4096, %s51, [#allocation6], 256, 256, 16
    $region25: #{tpu_custom_call.1} parent=1 // pred_fallthru
      _
    // Predicated region
    $region26: #{tpu_custom_call.1} parent=1 // pred_check
      _
    $region27: #{tpu_custom_call.1} parent=1 // pred_check_branch
      %58 = sbr.rel (0) target = $region29
    $region28: #{tpu_custom_call.1} parent=1 // pred_region
      _
    $region29: #{tpu_custom_call.1} parent=1 // pred_fallthru
      _
    // Predicated region
    $region30: #{tpu_custom_call.1} parent=1 // pred_check
      _
    $region31: #{tpu_custom_call.1} parent=1 // pred_check_branch
      %60 = sbr.rel (0) target = $region33
    $region32: #{tpu_custom_call.1} parent=1 // pred_region
      %61 = dma.done [#allocation3], 64
    $region33: #{tpu_custom_call.1} parent=1 // pred_fallthru
      _
    // Predicated region
    $region34: #{tpu_custom_call.1} parent=1 // pred_check
      _
    $region35: #{tpu_custom_call.1} parent=1 // pred_check_branch
      %63 = sbr.rel (0) target = $region37
    $region36: #{tpu_custom_call.1} parent=1 // pred_region
      %64 = dma.done [#allocation6], 512
    $region37: #{tpu_custom_call.1} parent=1 // pred_fallthru
      _
    // Predicated region
    $region38: #{tpu_custom_call.1} parent=1 // pred_check
      _
    $region39: #{tpu_custom_call.1} parent=1 // pred_check_branch
      %66 = sbr.rel (0) target = $region41
    $region40: #{tpu_custom_call.1} parent=1 // pred_region
      %67 = dma.done [#allocation6], 4096
    $region41: #{tpu_custom_call.1} parent=1 // pred_fallthru
      _
    %p69 = scmp.eq.s32.totalorder 0, 0
    // Predicated region
    $region42: #{tpu_custom_call.1} parent=1 // pred_check
      %p70 = pneg %p69
    $region43: #{tpu_custom_call.1} parent=1 // pred_check_branch
      %72 = sbr.rel (%p70) target = $region45
    $region44: #{tpu_custom_call.1} parent=1 // pred_region
      %73 = vst [vmem:[#allocation8] sm:$0xff] -inf
    $region45: #{tpu_custom_call.1} parent=1 // pred_fallthru
      _
    %v74 = vld [vmem:[#allocation2] sm:$0x3]
    %v75 = vld [vmem:[#allocation2 + $0x2] sm:$0x3]
    %76 = vxpose.xlu0.c.b16.start [1/8] %v74, 128
    %77 = vxpose.xlu0.c.b16.cont [2/8] 0, 128
    %78 = vxpose.xlu0.c.b16.cont [3/8] 0, 128
    %79 = vxpose.xlu0.c.b16.cont [4/8] 0, 128
    %80 = vxpose.xlu0.c.b16.cont [5/8] 0, 128
    %81 = vxpose.xlu0.c.b16.cont [6/8] 0, 128
    %82 = vxpose.xlu0.c.b16.cont [7/8] 0, 128
    %83 = vxpose.xlu0.c.b16.end [8/8] 0, 128
    %v84 = vpop.trf.xlu0
    %v85 = vpop.trf.xlu0
    %v86 = vpop.trf.xlu0
    %v87 = vpop.trf.xlu0
    %v88 = vpop.trf.xlu0
    %v89 = vpop.trf.xlu0
    %v90 = vpop.trf.xlu0
    %v91 = vpop.trf.xlu0
    %92 = vxpose.xlu0.c.b16.start [1/8] %v75, 128
    %93 = vxpose.xlu0.c.b16.cont [2/8] 0, 128
    %94 = vxpose.xlu0.c.b16.cont [3/8] 0, 128
    %95 = vxpose.xlu0.c.b16.cont [4/8] 0, 128
    %96 = vxpose.xlu0.c.b16.cont [5/8] 0, 128
    %97 = vxpose.xlu0.c.b16.cont [6/8] 0, 128
    %98 = vxpose.xlu0.c.b16.cont [7/8] 0, 128
    %99 = vxpose.xlu0.c.b16.end [8/8] 0, 128
    %v100 = vpop.trf.xlu0
    %v101 = vpop.trf.xlu0
    %v102 = vpop.trf.xlu0
    %v103 = vpop.trf.xlu0
    %v104 = vpop.trf.xlu0
    %v105 = vpop.trf.xlu0
    %v106 = vpop.trf.xlu0
    %v107 = vpop.trf.xlu0
    %v108 = vld [vmem:[%s1] sm:$0x3]
    %v109 = vld [vmem:[%s2] sm:$0x1]
    %v111 = vlaneseq
    %v112 = vshrl.u32 %v111, 7
    %v113 = vsub.s32 0, %v112
    %v114 = vrot.slane %v109, %v113
    %vm116 = vcmask 31744
    %v118 = vsel %vm116, %v84, 0
    %v121 = vsel %vm116, %v100, 0
    %vm123 = vcmask 1041408
    %v125 = vsel %vm123, %v108, 0
    %127 = vmatprep.subr.bf16.mxu0 0
    %128 = vmatpush1.bf16.msra.mxu0 %v125
    %129 = vmatprep.subr.bf16.mxu0 0
    %130 = vmatpush1.bf16.msra.mxu0 0
    %131 = vmatprep.subr.bf16.mxu0 0
    %132 = vmatpush1.bf16.msra.mxu0 0
    %133 = vmatprep.subr.bf16.mxu0 0
    %134 = vmatpush1.bf16.msra.mxu0 0
    %135 = vmatprep.subr.bf16.mxu0 0
    %136 = vmatpush1.bf16.msra.mxu0 0
    %137 = vmatprep.subr.bf16.mxu0 0
    %138 = vmatpush1.bf16.msra.mxu0 0
    %139 = vmatprep.subr.bf16.mxu0 0
    %140 = vmatpush1.bf16.msra.mxu0 0
    %141 = vmatprep.subr.bf16.mxu0 0
    %142 = vmatpush1.bf16.msra.mxu0 0
    %143 = vmatprep.subr.bf16.mxu0 0
    %144 = vmatpush1.bf16.msra.mxu0 0
    %145 = vmatprep.subr.bf16.mxu0 0
    %146 = vmatpush1.bf16.msra.mxu0 0
    %147 = vmatprep.subr.bf16.mxu0 0
    %148 = vmatpush1.bf16.msra.mxu0 0
    %149 = vmatprep.subr.bf16.mxu0 0
    %150 = vmatpush1.bf16.msra.mxu0 0
    %151 = vmatprep.subr.bf16.mxu0 0
    %152 = vmatpush1.bf16.msra.mxu0 0
    %153 = vmatprep.subr.bf16.mxu0 0
    %154 = vmatpush1.bf16.msra.mxu0 0
    %155 = vmatprep.subr.bf16.mxu0 0
    %156 = vmatpush1.bf16.msra.mxu0 0
    %157 = vmatprep.subr.bf16.mxu0 0
    %158 = vmatpush1.bf16.msra.mxu0 0
    %159 = vmatprep.mubr.bf16.mxu0 0
    %160 = vmatmul.mubr.bf16.gmra.mrb[0].mxu0 %v118
    %v161 = vpop.f32.mrb[0].mxu0
    %v162 = vadd.f32 %v114, %v161
    %v163 = vpop.f32.mrb[0].mxu0
    %v164 = vpop.f32.mrb[0].mxu0
    %v165 = vadd.f32 %v114, %v164
    %v166 = vpop.f32.mrb[0].mxu0
    %167 = vmatprep.mubr.bf16.mxu0 0
    %168 = vmatmul.mubr.bf16.gmra.mrb[0].mxu0 %v121
    %v169 = vpop.f32.mrb[0].mxu0
    %v170 = vadd.f32 %v114, %v169
    %v171 = vpop.f32.mrb[0].mxu0
    %v172 = vpop.f32.mrb[0].mxu0
    %v173 = vadd.f32 %v114, %v172
    %v174 = vpop.f32.mrb[0].mxu0
    %175 = vdwg.mxu0
    %v176 = vmax.f32 %v162, 0.0
    %v177 = vmax.f32 %v165, 0.0
    %v178 = vmax.f32 %v170, 0.0
    %v179 = vmax.f32 %v173, 0.0
    %v180 = vpack.c.bf16 %v177, %v176
    %v181 = vpack.c.bf16 %v179, %v178
    %v182 = vld [vmem:[#allocation5] sm:$0xf]
    %v183 = vld [vmem:[#allocation5 + $0x4] sm:$0xf]
    %v184 = vld [vmem:[#allocation5 + $0x8] sm:$0xf]
    %v185 = vld [vmem:[#allocation5 + $0xc] sm:$0xf]
    %v186 = vld [vmem:[#allocation5 + $0x10] sm:$0xf]
    %v187 = vld [vmem:[#allocation5 + $0x14] sm:$0xf]
    %v188 = vld [vmem:[#allocation5 + $0x18] sm:$0xf]
    %v189 = vld [vmem:[#allocation5 + $0x1c] sm:$0xf]
    %v190 = vld [vmem:[%s4] sm:$0x1]
    %v192 = vlaneseq
    %v193 = vshrl.u32 %v192, 7
    %v194 = vsub.s32 0, %v193
    %v195 = vrot.slane %v190, %v194
    %v205 = vunpack.c.l.b16 %v182
    %v206 = vunpack.c.l.b16 %v183
    %v207 = vunpack.c.l.b16 %v184
    %v208 = vunpack.c.l.b16 %v185
    %v209 = vunpack.c.l.b16 %v186
    %v210 = vunpack.c.l.b16 %v187
    %v211 = vunpack.c.l.b16 %v188
    %v212 = vunpack.c.l.b16 %v189
    %v213 = vpack.c.b16 %v206, %v205
    %v214 = vpack.c.b16 %v208, %v207
    %v215 = vpack.c.b16 %v210, %v209
    %v216 = vpack.c.b16 %v212, %v211
    %vm221 = vcmask 523264
    %v223 = vsel %vm221, %v180, 0
    %v226 = vsel %vm221, %v181, 0
    %228 = vmatprep.subr.bf16.mxu0 0
    %229 = vmatpush1.bf16.msra.mxu0 %v213
    %230 = vmatprep.subr.bf16.mxu0 0
    %231 = vmatpush1.bf16.msra.mxu0 %v214
    %232 = vmatprep.subr.bf16.mxu0 0
    %233 = vmatpush1.bf16.msra.mxu0 %v215
    %234 = vmatprep.subr.bf16.mxu0 0
    %235 = vmatpush1.bf16.msra.mxu0 %v216
    %236 = vmatprep.subr.bf16.mxu0 0
    %237 = vmatpush1.bf16.msra.mxu0 0
    %238 = vmatprep.subr.bf16.mxu0 0
    %239 = vmatpush1.bf16.msra.mxu0 0
    %240 = vmatprep.subr.bf16.mxu0 0
    %241 = vmatpush1.bf16.msra.mxu0 0
    %242 = vmatprep.subr.bf16.mxu0 0
    %243 = vmatpush1.bf16.msra.mxu0 0
    %244 = vmatprep.subr.bf16.mxu0 0
    %245 = vmatpush1.bf16.msra.mxu0 0
    %246 = vmatprep.subr.bf16.mxu0 0
    %247 = vmatpush1.bf16.msra.mxu0 0
    %248 = vmatprep.subr.bf16.mxu0 0
    %249 = vmatpush1.bf16.msra.mxu0 0
    %250 = vmatprep.subr.bf16.mxu0 0
    %251 = vmatpush1.bf16.msra.mxu0 0
    %252 = vmatprep.subr.bf16.mxu0 0
    %253 = vmatpush1.bf16.msra.mxu0 0
    %254 = vmatprep.subr.bf16.mxu0 0
    %255 = vmatpush1.bf16.msra.mxu0 0
    %256 = vmatprep.subr.bf16.mxu0 0
    %257 = vmatpush1.bf16.msra.mxu0 0
    %258 = vmatprep.subr.bf16.mxu0 0
    %259 = vmatpush1.bf16.msra.mxu0 0
    %260 = vmatprep.mubr.bf16.mxu0 0
    %261 = vmatmul.mubr.bf16.gmra.mrb[0].mxu0 %v223
    %v262 = vpop.f32.mrb[0].mxu0
    %v263 = vadd.f32 %v195, %v262
    %v264 = vpop.f32.mrb[0].mxu0
    %v265 = vpop.f32.mrb[0].mxu0
    %v266 = vadd.f32 %v195, %v265
    %v267 = vpop.f32.mrb[0].mxu0
    %268 = vmatprep.mubr.bf16.mxu0 0
    %269 = vmatmul.mubr.bf16.gmra.mrb[0].mxu0 %v226
    %v270 = vpop.f32.mrb[0].mxu0
    %v271 = vadd.f32 %v195, %v270
    %v272 = vpop.f32.mrb[0].mxu0
    %v273 = vpop.f32.mrb[0].mxu0
    %v274 = vadd.f32 %v195, %v273
    %v275 = vpop.f32.mrb[0].mxu0
    %276 = vdwg.mxu0
    %v277 = vmax.f32 %v263, 0.0
    %v278 = vmax.f32 %v266, 0.0
    %v279 = vmax.f32 %v271, 0.0
    %v280 = vmax.f32 %v274, 0.0
    %v281 = vpack.c.bf16 %v278, %v277
    %v282 = vpack.c.bf16 %v280, %v279
    %v283 = vld [vmem:[#allocation7] sm:$0xff]
    %v284 = vld [vmem:[#allocation7 + $0x8] sm:$0xff]
    %v285 = vld [vmem:[#allocation7 + $0x10] sm:$0xff]
    %v286 = vld [vmem:[#allocation7 + $0x18] sm:$0xff]
    %v287 = vld [vmem:[#allocation7 + $0x20] sm:$0xff]
    %v288 = vld [vmem:[#allocation7 + $0x28] sm:$0xff]
    %v289 = vld [vmem:[#allocation7 + $0x30] sm:$0xff]
    %v290 = vld [vmem:[#allocation7 + $0x38] sm:$0xff]
    %v291 = vld [vmem:[#allocation7 + $0x40] sm:$0xff]
    %v292 = vld [vmem:[#allocation7 + $0x48] sm:$0xff]
    %v293 = vld [vmem:[#allocation7 + $0x50] sm:$0xff]
    %v294 = vld [vmem:[#allocation7 + $0x58] sm:$0xff]
    %v295 = vld [vmem:[#allocation7 + $0x60] sm:$0xff]
    %v296 = vld [vmem:[#allocation7 + $0x68] sm:$0xff]
    %v297 = vld [vmem:[#allocation7 + $0x70] sm:$0xff]
    %v298 = vld [vmem:[#allocation7 + $0x78] sm:$0xff]
    %v299 = vld [vmem:[#allocation7 + $0x80] sm:$0xff]
    %v300 = vld [vmem:[#allocation7 + $0x88] sm:$0xff]
    %v301 = vld [vmem:[#allocation7 + $0x90] sm:$0xff]
    %v302 = vld [vmem:[#allocation7 + $0x98] sm:$0xff]
    %v303 = vld [vmem:[#allocation7 + $0xa0] sm:$0xff]
    %v304 = vld [vmem:[#allocation7 + $0xa8] sm:$0xff]
    %v305 = vld [vmem:[#allocation7 + $0xb0] sm:$0xff]
    %v306 = vld [vmem:[#allocation7 + $0xb8] sm:$0xff]
    %v307 = vld [vmem:[#allocation7 + $0xc0] sm:$0xff]
    %v308 = vld [vmem:[#allocation7 + $0xc8] sm:$0xff]
    %v309 = vld [vmem:[#allocation7 + $0xd0] sm:$0xff]
    %v310 = vld [vmem:[#allocation7 + $0xd8] sm:$0xff]
    %v311 = vld [vmem:[#allocation7 + $0xe0] sm:$0xff]
    %v312 = vld [vmem:[#allocation7 + $0xe8] sm:$0xff]
    %v313 = vld [vmem:[#allocation7 + $0xf0] sm:$0xff]
    %v314 = vld [vmem:[#allocation7 + $0xf8] sm:$0xff]
    %v315 = vld [vmem:[%s6] sm:$0xf]
    %v317 = vlaneseq
    %v318 = vshrl.u32 %v317, 7
    %v319 = vsub.s32 0, %v318
    %v320 = vrot.slane %v315, %v319
    %v321 = vlaneseq
    %v322 = vshrl.u32 %v321, 7
    %v323 = vsub.s32 1, %v322
    %v324 = vrot.slane %v315, %v323
    %v325 = vlaneseq
    %v326 = vshrl.u32 %v325, 7
    %v327 = vsub.s32 2, %v326
    %v328 = vrot.slane %v315, %v327
    %v329 = vlaneseq
    %v330 = vshrl.u32 %v329, 7
    %v331 = vsub.s32 3, %v330
    %v332 = vrot.slane %v315, %v331
    %v369 = vunpack.c.l.b16 %v283
    %v370 = vunpack.c.h.b16 %v283
    %v371 = vunpack.c.l.b16 %v284
    %v372 = vunpack.c.h.b16 %v284
    %v373 = vunpack.c.l.b16 %v285
    %v374 = vunpack.c.h.b16 %v285
    %v375 = vunpack.c.l.b16 %v286
    %v376 = vunpack.c.h.b16 %v286
    %v377 = vunpack.c.l.b16 %v287
    %v378 = vunpack.c.h.b16 %v287
    %v379 = vunpack.c.l.b16 %v288
    %v380 = vunpack.c.h.b16 %v288
    %v381 = vunpack.c.l.b16 %v289
    %v382 = vunpack.c.h.b16 %v289
    %v383 = vunpack.c.l.b16 %v290
    %v384 = vunpack.c.h.b16 %v290
    %v385 = vunpack.c.l.b16 %v291
    %v386 = vunpack.c.h.b16 %v291
    %v387 = vunpack.c.l.b16 %v292
    %v388 = vunpack.c.h.b16 %v292
    %v389 = vunpack.c.l.b16 %v293
    %v390 = vunpack.c.h.b16 %v293
    %v391 = vunpack.c.l.b16 %v294
    %v392 = vunpack.c.h.b16 %v294
    %v393 = vunpack.c.l.b16 %v295
    %v394 = vunpack.c.h.b16 %v295
    %v395 = vunpack.c.l.b16 %v296
    %v396 = vunpack.c.h.b16 %v296
    %v397 = vunpack.c.l.b16 %v297
    %v398 = vunpack.c.h.b16 %v297
    %v399 = vunpack.c.l.b16 %v298
    %v400 = vunpack.c.h.b16 %v298
    %v401 = vunpack.c.l.b16 %v299
    %v402 = vunpack.c.h.b16 %v299
    %v403 = vunpack.c.l.b16 %v300
    %v404 = vunpack.c.h.b16 %v300
    %v405 = vunpack.c.l.b16 %v301
    %v406 = vunpack.c.h.b16 %v301
    %v407 = vunpack.c.l.b16 %v302
    %v408 = vunpack.c.h.b16 %v302
    %v409 = vunpack.c.l.b16 %v303
    %v410 = vunpack.c.h.b16 %v303
    %v411 = vunpack.c.l.b16 %v304
    %v412 = vunpack.c.h.b16 %v304
    %v413 = vunpack.c.l.b16 %v305
    %v414 = vunpack.c.h.b16 %v305
    %v415 = vunpack.c.l.b16 %v306
    %v416 = vunpack.c.h.b16 %v306
    %v417 = vunpack.c.l.b16 %v307
    %v418 = vunpack.c.h.b16 %v307
    %v419 = vunpack.c.l.b16 %v308
    %v420 = vunpack.c.h.b16 %v308
    %v421 = vunpack.c.l.b16 %v309
    %v422 = vunpack.c.h.b16 %v309
    %v423 = vunpack.c.l.b16 %v310
    %v424 = vunpack.c.h.b16 %v310
    %v425 = vunpack.c.l.b16 %v311
    %v426 = vunpack.c.h.b16 %v311
    %v427 = vunpack.c.l.b16 %v312
    %v428 = vunpack.c.h.b16 %v312
    %v429 = vunpack.c.l.b16 %v313
    %v430 = vunpack.c.h.b16 %v313
    %v431 = vunpack.c.l.b16 %v314
    %v432 = vunpack.c.h.b16 %v314
    %v433 = vpack.c.b16 %v373, %v369
    %v434 = vpack.c.b16 %v374, %v370
    %v435 = vpack.c.b16 %v375, %v371
    %v436 = vpack.c.b16 %v376, %v372
    %v437 = vpack.c.b16 %v381, %v377
    %v438 = vpack.c.b16 %v382, %v378
    %v439 = vpack.c.b16 %v383, %v379
    %v440 = vpack.c.b16 %v384, %v380
    %v441 = vpack.c.b16 %v389, %v385
    %v442 = vpack.c.b16 %v390, %v386
    %v443 = vpack.c.b16 %v391, %v387
    %v444 = vpack.c.b16 %v392, %v388
    %v445 = vpack.c.b16 %v397, %v393
    %v446 = vpack.c.b16 %v398, %v394
    %v447 = vpack.c.b16 %v399, %v395
    %v448 = vpack.c.b16 %v400, %v396
    %v449 = vpack.c.b16 %v405, %v401
    %v450 = vpack.c.b16 %v406, %v402
    %v451 = vpack.c.b16 %v407, %v403
    %v452 = vpack.c.b16 %v408, %v404
    %v453 = vpack.c.b16 %v413, %v409
    %v454 = vpack.c.b16 %v414, %v410
    %v455 = vpack.c.b16 %v415, %v411
    %v456 = vpack.c.b16 %v416, %v412
    %v457 = vpack.c.b16 %v421, %v417
    %v458 = vpack.c.b16 %v422, %v418
    %v459 = vpack.c.b16 %v423, %v419
    %v460 = vpack.c.b16 %v424, %v420
    %v461 = vpack.c.b16 %v429, %v425
    %v462 = vpack.c.b16 %v430, %v426
    %v463 = vpack.c.b16 %v431, %v427
    %v464 = vpack.c.b16 %v432, %v428
    %497 = vmatprep.subr.bf16.mxu0 %v434
    %498 = vmatpush1.bf16.msra.mxu0 %v433
    %499 = vmatprep.subr.bf16.mxu0 %v438
    %500 = vmatpush1.bf16.msra.mxu0 %v437
    %501 = vmatprep.subr.bf16.mxu0 %v442
    %502 = vmatpush1.bf16.msra.mxu0 %v441
    %503 = vmatprep.subr.bf16.mxu0 %v446
    %504 = vmatpush1.bf16.msra.mxu0 %v445
    %505 = vmatprep.subr.bf16.mxu0 %v450
    %506 = vmatpush1.bf16.msra.mxu0 %v449
    %507 = vmatprep.subr.bf16.mxu0 %v454
    %508 = vmatpush1.bf16.msra.mxu0 %v453
    %509 = vmatprep.subr.bf16.mxu0 %v458
    %510 = vmatpush1.bf16.msra.mxu0 %v457
    %511 = vmatprep.subr.bf16.mxu0 %v462
    %512 = vmatpush1.bf16.msra.mxu0 %v461
    %513 = vmatprep.subr.bf16.mxu0 0
    %514 = vmatpush1.bf16.msra.mxu0 0
    %515 = vmatprep.subr.bf16.mxu0 0
    %516 = vmatpush1.bf16.msra.mxu0 0
    %517 = vmatprep.subr.bf16.mxu0 0
    %518 = vmatpush1.bf16.msra.mxu0 0
    %519 = vmatprep.subr.bf16.mxu0 0
    %520 = vmatpush1.bf16.msra.mxu0 0
    %521 = vmatprep.subr.bf16.mxu0 0
    %522 = vmatpush1.bf16.msra.mxu0 0
    %523 = vmatprep.subr.bf16.mxu0 0
    %524 = vmatpush1.bf16.msra.mxu0 0
    %525 = vmatprep.subr.bf16.mxu0 0
    %526 = vmatpush1.bf16.msra.mxu0 0
    %527 = vmatprep.subr.bf16.mxu0 0
    %528 = vmatpush1.bf16.msra.mxu0 0
    %529 = vmatprep.mubr.bf16.mxu0 0
    %530 = vmatmul.mubr.bf16.gmra.mrb[0].mxu0 %v281
    %v531 = vpop.f32.mrb[0].mxu0
    %v532 = vadd.f32 %v320, %v531
    %v533 = vpop.f32.mrb[0].mxu0
    %v534 = vadd.f32 %v324, %v533
    %v535 = vpop.f32.mrb[0].mxu0
    %v536 = vadd.f32 %v320, %v535
    %v537 = vpop.f32.mrb[0].mxu0
    %v538 = vadd.f32 %v324, %v537
    %539 = vmatprep.mubr.bf16.mxu0 0
    %540 = vmatmul.mubr.bf16.gmra.mrb[0].mxu0 %v282
    %v541 = vpop.f32.mrb[0].mxu0
    %v542 = vadd.f32 %v320, %v541
    %v543 = vpop.f32.mrb[0].mxu0
    %v544 = vadd.f32 %v324, %v543
    %v545 = vpop.f32.mrb[0].mxu0
    %v546 = vadd.f32 %v320, %v545
    %v547 = vpop.f32.mrb[0].mxu0
    %v548 = vadd.f32 %v324, %v547
    %549 = vdwg.mxu0
    %550 = vmatprep.subr.bf16.mxu0 %v436
    %551 = vmatpush1.bf16.msra.mxu0 %v435
    %552 = vmatprep.subr.bf16.mxu0 %v440
    %553 = vmatpush1.bf16.msra.mxu0 %v439
    %554 = vmatprep.subr.bf16.mxu0 %v444
    %555 = vmatpush1.bf16.msra.mxu0 %v443
    %556 = vmatprep.subr.bf16.mxu0 %v448
    %557 = vmatpush1.bf16.msra.mxu0 %v447
    %558 = vmatprep.subr.bf16.mxu0 %v452
    %559 = vmatpush1.bf16.msra.mxu0 %v451
    %560 = vmatprep.subr.bf16.mxu0 %v456
    %561 = vmatpush1.bf16.msra.mxu0 %v455
    %562 = vmatprep.subr.bf16.mxu0 %v460
    %563 = vmatpush1.bf16.msra.mxu0 %v459
    %564 = vmatprep.subr.bf16.mxu0 %v464
    %565 = vmatpush1.bf16.msra.mxu0 %v463
    %566 = vmatprep.subr.bf16.mxu0 0
    %567 = vmatpush1.bf16.msra.mxu0 0
    %568 = vmatprep.subr.bf16.mxu0 0
    %569 = vmatpush1.bf16.msra.mxu0 0
    %570 = vmatprep.subr.bf16.mxu0 0
    %571 = vmatpush1.bf16.msra.mxu0 0
    %572 = vmatprep.subr.bf16.mxu0 0
    %573 = vmatpush1.bf16.msra.mxu0 0
    %574 = vmatprep.subr.bf16.mxu0 0
    %575 = vmatpush1.bf16.msra.mxu0 0
    %576 = vmatprep.subr.bf16.mxu0 0
    %577 = vmatpush1.bf16.msra.mxu0 0
    %578 = vmatprep.subr.bf16.mxu0 0
    %579 = vmatpush1.bf16.msra.mxu0 0
    %580 = vmatprep.subr.bf16.mxu0 0
    %581 = vmatpush1.bf16.msra.mxu0 0
    %582 = vmatprep.mubr.bf16.mxu0 0
    %583 = vmatmul.mubr.bf16.gmra.mrb[0].mxu0 %v281
    %v584 = vpop.f32.mrb[0].mxu0
    %v585 = vadd.f32 %v328, %v584
    %v586 = vpop.f32.mrb[0].mxu0
    %v587 = vadd.f32 %v332, %v586
    %v588 = vpop.f32.mrb[0].mxu0
    %v589 = vadd.f32 %v328, %v588
    %v590 = vpop.f32.mrb[0].mxu0
    %v591 = vadd.f32 %v332, %v590
    %592 = vmatprep.mubr.bf16.mxu0 0
    %593 = vmatmul.mubr.bf16.gmra.mrb[0].mxu0 %v282
    %v594 = vpop.f32.mrb[0].mxu0
    %v595 = vadd.f32 %v328, %v594
    %v596 = vpop.f32.mrb[0].mxu0
    %v597 = vadd.f32 %v332, %v596
    %v598 = vpop.f32.mrb[0].mxu0
    %v599 = vadd.f32 %v328, %v598
    %v600 = vpop.f32.mrb[0].mxu0
    %v601 = vadd.f32 %v332, %v600
    %602 = vdwg.mxu0
    %v603 = vmax.f32 %v532, %v536
    %v604 = vrot.slane %v603, 4
    %v605 = vmax.f32 %v603, %v604
    %v606 = vrot.slane %v605, 2
    %v607 = vmax.f32 %v605, %v606
    %v608 = vrot.slane %v607, 1
    %v609 = vmax.f32 %v607, %v608
    %v610 = vmax.f32 %v534, %v538
    %v611 = vrot.slane %v610, 4
    %v612 = vmax.f32 %v610, %v611
    %v613 = vrot.slane %v612, 2
    %v614 = vmax.f32 %v612, %v613
    %v615 = vrot.slane %v614, 1
    %v616 = vmax.f32 %v614, %v615
    %v617 = vmax.f32 %v585, %v589
    %v618 = vrot.slane %v617, 4
    %v619 = vmax.f32 %v617, %v618
    %v620 = vrot.slane %v619, 2
    %v621 = vmax.f32 %v619, %v620
    %v622 = vrot.slane %v621, 1
    %v623 = vmax.f32 %v621, %v622
    %v624 = vmax.f32 %v587, %v591
    %v625 = vrot.slane %v624, 4
    %v626 = vmax.f32 %v624, %v625
    %v627 = vrot.slane %v626, 2
    %v628 = vmax.f32 %v626, %v627
    %v629 = vrot.slane %v628, 1
    %v630 = vmax.f32 %v628, %v629
    %v631 = vmax.f32 %v542, %v546
    %v632 = vrot.slane %v631, 4
    %v633 = vmax.f32 %v631, %v632
    %v634 = vrot.slane %v633, 2
    %v635 = vmax.f32 %v633, %v634
    %v636 = vrot.slane %v635, 1
    %v637 = vmax.f32 %v635, %v636
    %v638 = vmax.f32 %v544, %v548
    %v639 = vrot.slane %v638, 4
    %v640 = vmax.f32 %v638, %v639
    %v641 = vrot.slane %v640, 2
    %v642 = vmax.f32 %v640, %v641
    %v643 = vrot.slane %v642, 1
    %v644 = vmax.f32 %v642, %v643
    %v645 = vmax.f32 %v595, %v599
    %v646 = vrot.slane %v645, 4
    %v647 = vmax.f32 %v645, %v646
    %v648 = vrot.slane %v647, 2
    %v649 = vmax.f32 %v647, %v648
    %v650 = vrot.slane %v649, 1
    %v651 = vmax.f32 %v649, %v650
    %v652 = vmax.f32 %v597, %v601
    %v653 = vrot.slane %v652, 4
    %v654 = vmax.f32 %v652, %v653
    %v655 = vrot.slane %v654, 2
    %v656 = vmax.f32 %v654, %v655
    %v657 = vrot.slane %v656, 1
    %v658 = vmax.f32 %v656, %v657
    %v659 = vld [vmem:[#allocation8] sm:$0xff]
    %v668 = vcombine.low %v609, %v616
    %v669 = vcombine.low %v623, %v630
    %v671 = vunpack.c.l.s4 1983009808
    %v672 = vunpack.c.0.s8 %v671
    %v673 = vlaneseq
    %v674 = vshrl.u32 %v673, 7
    %v675 = vsub.s32 %v672, %v674
    %v676 = vrot.slane %v668, %v675
    %v678 = vunpack.c.l.s4 1983009808
    %v679 = vunpack.c.0.s8 %v678
    %v680 = vlaneseq
    %v681 = vshrl.u32 %v680, 7
    %v682 = vsub.s32 %v679, %v681
    %v683 = vrot.slane %v669, %v682
    %v684 = vcombine.low %v676, %v683
    %v685 = vcombine.low %v637, %v644
    %v686 = vcombine.low %v651, %v658
    %v688 = vunpack.c.l.s4 1983009808
    %v689 = vunpack.c.0.s8 %v688
    %v690 = vlaneseq
    %v691 = vshrl.u32 %v690, 7
    %v692 = vsub.s32 %v689, %v691
    %v693 = vrot.slane %v685, %v692
    %v695 = vunpack.c.l.s4 1983009808
    %v696 = vunpack.c.0.s8 %v695
    %v697 = vlaneseq
    %v698 = vshrl.u32 %v697, 7
    %v699 = vsub.s32 %v696, %v698
    %v700 = vrot.slane %v686, %v699
    %v701 = vcombine.low %v693, %v700
    %vm702 = vcmask 1044484
    %v703 = vsel %vm702, %v684, %v684
    %vm704 = vcmask 1046534
    %v705 = vsel %vm704, %v684, %v703
    %v706 = vrot.slane %v701, 7
    %vm707 = vcmask 1041409
    %v708 = vsel %vm707, %v706, %v705
    %vm709 = vcmask 1043459
    %v710 = vsel %vm709, %v706, %v708
    %vm711 = vcmask 1045509
    %v712 = vsel %vm711, %v706, %v710
    %vm713 = vcmask 1047559
    %v714 = vsel %vm713, %v706, %v712
    %v716 = vmax.f32 %v659, %v714
    %717 = vst [vmem:[#allocation8] sm:$0xff] %v716
    // Predicated region
    $region46: #{tpu_custom_call.1} parent=1 // pred_check
      _
    $region47: #{tpu_custom_call.1} parent=1 // pred_check_branch
      %719 = sbr.rel (0) target = $region49
    $region48: #{tpu_custom_call.1} parent=1 // pred_region
      %s721 = ssub.s32 128, 128
      %722 = vsyncadd [#allocation4], %s721
      %s724 = sshll.u32 [#allocation8], 4
      %s725 = int_to_ptr.vmem [resolvable:$true] %s724
      %727 = dma.vmem_to_hbm [thread:$0]  %s725, 128, %s7, [#allocation4]
    $region49: #{tpu_custom_call.1} parent=1 // pred_fallthru
      _
    // Predicated region
    $region50: #{tpu_custom_call.1} parent=1 // pred_check
      _
    $region51: #{tpu_custom_call.1} parent=1 // pred_check_branch
      %729 = sbr.rel (0) target = $region53
    $region52: #{tpu_custom_call.1} parent=1 // pred_region
      %730 = dma.done [#allocation4], 128
    $region53: #{tpu_custom_call.1} parent=1 // pred_fallthru
      _
    %731 = vsyncpa [#allocation3], 1
    %732 = vsyncpa [#allocation6], 1
    %733 = vsyncpa [#allocation4], 1

</llo_original>
